<compile_context>
chip_gen: v7x
topology: tpu7x:2x2x1
jax: 0.10.0
libtpu: 0.0.40
codegen_flags: <defaults>
</compile_context>

<pallas_src>
import functools

import jax
import jax.numpy as jnp
from jax.experimental import pallas as pl
from jax.experimental.pallas import tpu as pltpu

LANE = 128  # vreg lane width is 128 on every TPU generation


def _round_up(x, m):
    return ((x + m - 1) // m) * m


def fused_mlp_kernel(x_ref, w_ref, gamma_ref, beta_ref, o_ref, act_ref, *,
                     eps: float, batch: int, mxu_dtype):
    """One grid step == one [Linear -> BatchNorm1d(batch stats) -> ReLU] layer.

    x_ref:     (B, Hp)     padded input (VMEM), read only at layer 0
    w_ref:     (1, Hp, Hp) this layer's pre-transposed, zero-padded weights (In, Out)
    gamma_ref: (1, 1, Hp)  BN gamma (padded with 0 -> dead lanes get scale 0)
    beta_ref:  (1, 1, Hp)  BN beta  (padded with 0)
    o_ref:     (B, Hp)     padded output, written only at the last layer
    act_ref:   (B, Hp) f32 persistent VMEM scratch carrying the activation
    """
    layer = pl.program_id(0)
    last = pl.num_programs(0) - 1

    @pl.when(layer == 0)
    def _():
        act_ref[...] = x_ref[...].astype(jnp.float32)

    a = act_ref[...]
    if jnp.dtype(mxu_dtype) != jnp.dtype(jnp.float32):
        a = a.astype(mxu_dtype)  # bf16 MXU operands; BN math stays fp32
    # Linear (bias dropped: exactly cancelled by BN mean subtraction).
    y = jnp.dot(a, w_ref[0], preferred_element_type=jnp.float32)  # (B, Hp) on MXU

    # BatchNorm1d training-mode stats: two-pass (shifted) variance, fp32.
    inv_b = jnp.float32(1.0 / batch)
    mean = jnp.sum(y, axis=0, keepdims=True) * inv_b            # (1, Hp)
    centered = y - mean
    var = jnp.sum(centered * centered, axis=0, keepdims=True) * inv_b
    scale = gamma_ref[0] * jax.lax.rsqrt(var + eps)             # EUP rsqrt, (1, Hp)
    out = centered * scale + beta_ref[0]                        # one FMA / element

    @pl.when(layer < last)
    def _():
        act_ref[...] = jnp.maximum(out, 0.0)                    # ReLU, stays in VMEM

    @pl.when(layer == last)
    def _():
        o_ref[...] = out.astype(o_ref.dtype)                    # final ReLU dropped


def pack_params(params, sizes, mxu_dtype):
    """Pad/stack PyTorch-layout params into lane-dense tensors (one-time, host side).

    Weights are transposed to (In, Out) so the kernel never transposes.
    Padded columns get W=0, gamma=0, beta=0 -> they stay exactly 0 through BN+ReLU.
    The Linear bias is intentionally dropped (cancelled by BN mean subtraction).
    """
    hp = _round_up(max(sizes), LANE)
    n_layers = len(params)
    w_stack = jnp.zeros((n_layers, hp, hp), mxu_dtype)
    g_stack = jnp.zeros((n_layers, 1, hp), jnp.float32)   # 0-padded gamma: dead lanes get scale 0
    bt_stack = jnp.zeros((n_layers, 1, hp), jnp.float32)
    for l, (w, _b, gamma, beta) in enumerate(params):
        out_d, in_d = w.shape
        w_stack = w_stack.at[l, :in_d, :out_d].set(w.T.astype(mxu_dtype))
        g_stack = g_stack.at[l, 0, :out_d].set(gamma[0])
        bt_stack = bt_stack.at[l, 0, :out_d].set(beta[0])
    return w_stack, g_stack, bt_stack, hp


def mlp_forward(x, params, sizes, eps=1e-5, mxu_dtype=jnp.float32):
    """Fused forward pass: one pallas_call, one grid step per layer."""
    batch, in_dim = x.shape
    out_dim = sizes[-1]
    n_layers = len(params)

    w_stack, g_stack, bt_stack, hp = pack_params(params, sizes, mxu_dtype)
    x_pad = jnp.pad(x.astype(jnp.float32), ((0, 0), (0, hp - in_dim)))

    # Actual VMEM footprint (+~50% headroom), capped well below v7x's 64 MiB.
    b_f32 = 4
    b_w = jnp.dtype(mxu_dtype).itemsize
    footprint = (2 * batch * hp * b_f32        # x, double-buffered
                 + 2 * hp * hp * b_w           # one layer's weights, double-buffered
                 + 2 * 2 * hp * b_f32 * 2      # gamma + beta, double-buffered
                 + 2 * batch * hp * b_f32      # out, double-buffered
                 + batch * hp * b_f32)         # persistent activation scratch
    vmem_limit = int(min(max(footprint * 3 // 2 + (2 << 20), 8 << 20), 48 << 20))

    kernel = functools.partial(fused_mlp_kernel,
                               eps=eps, batch=batch, mxu_dtype=mxu_dtype)

    out_pad = pl.pallas_call(
        kernel,
        out_shape=jax.ShapeDtypeStruct((batch, hp), jnp.float32),
        grid=(n_layers,),
        in_specs=[
            pl.BlockSpec((batch, hp), lambda l: (0, 0)),
            pl.BlockSpec((1, hp, hp), lambda l: (l, 0, 0)),
            pl.BlockSpec((1, 1, hp), lambda l: (l, 0, 0)),
            pl.BlockSpec((1, 1, hp), lambda l: (l, 0, 0)),
        ],
        out_specs=pl.BlockSpec((batch, hp), lambda l: (0, 0)),
        scratch_shapes=[pltpu.VMEM((batch, hp), jnp.float32)],
        compiler_params=pltpu.CompilerParams(
            dimension_semantics=("arbitrary",),
            vmem_limit_bytes=vmem_limit,
        ),
    )(x_pad, w_stack, g_stack, bt_stack)

    return out_pad[:, :out_dim]


def init_mlp_params(key, sizes):
    """PyTorch-default init: Linear W,b ~ U(-1/sqrt(fan_in), 1/sqrt(fan_in));
    BatchNorm1d gamma=1, beta=0.  (Bias is kept for the reference; the kernel
    drops it because training-mode BN cancels it exactly.)"""
    params = []
    for s in range(len(sizes) - 1):
        fan_in, fan_out = sizes[s], sizes[s + 1]
        key, kw, kb = jax.random.split(key, 3)
        bound = 1.0 / jnp.sqrt(jnp.float32(fan_in))
        w = jax.random.uniform(kw, (fan_out, fan_in), jnp.float32, -bound, bound)
        b = jax.random.uniform(kb, (1, fan_out), jnp.float32, -bound, bound)
        gamma = jnp.ones((1, fan_out), jnp.float32)
        beta = jnp.zeros((1, fan_out), jnp.float32)
        params.append((w, b, gamma, beta))
    return params


def mlp_forward_ref(x, params, eps=1e-5):
    """Pure-JAX reference with exact PyTorch forward semantics (bias included)."""
    n_layers = len(params)
    for li, (w, b, gamma, beta) in enumerate(params):
        y = x @ w.T + b
        mean = jnp.mean(y, axis=0, keepdims=True)
        var = jnp.mean((y - mean) ** 2, axis=0, keepdims=True)
        y = gamma * (y - mean) * jax.lax.rsqrt(var + eps) + beta
        if li < n_layers - 1:
            y = jnp.maximum(y, 0.0)
        x = y
    return x


if __name__ == "__main__":
    hidden = 64                           # GEARS default hidden_size
    sizes = [hidden, 2 * hidden, hidden]  # recovery_w: MLP([h, 2h, h])
    batch = 128                           # multiple of 8 sublanes, fills MXU M

    key = jax.random.PRNGKey(0)
    key, kx = jax.random.split(key)
    x = jax.random.normal(kx, (batch, sizes[0]), jnp.float32)
    params = init_mlp_params(key, sizes)

    ref = mlp_forward_ref(x, params)

    # fp32 datapath (default): exact check.
    out = jax.block_until_ready(mlp_forward(x, params, sizes))
    assert out.shape == (batch, sizes[-1])
    err = float(jnp.max(jnp.abs(out - ref)))
    assert jnp.allclose(out, ref, atol=2e-4, rtol=2e-4), f"fp32 mismatch (max_err={err})"

    # bf16 MXU-operand path (v6e/v7x fast path; fp32 accumulation, fp32 BN).
    out_bf = jax.block_until_ready(
        mlp_forward(x, params, sizes, mxu_dtype=jnp.bfloat16))
    err_bf = float(jnp.max(jnp.abs(out_bf - ref)))
    assert jnp.allclose(out_bf, ref, atol=1e-1, rtol=1e-1), f"bf16 mismatch (max_err={err_bf})"

    print("KERNEL_OK")
</pallas_src>

<mosaic_0001>
module attributes {stable_mosaic.version = 11 : i64} {
  func.func @fused_mlp_kernel(%arg0: i32, %arg1: memref<128x128xf32, #tpu.memory_space<vmem>>, %arg2: memref<1x128x128xf32, #tpu.memory_space<vmem>>, %arg3: memref<1x1x128xf32, #tpu.memory_space<vmem>>, %arg4: memref<1x1x128xf32, #tpu.memory_space<vmem>>, %arg5: memref<128x128xf32, #tpu.memory_space<vmem>>, %arg6: memref<128x128xf32, #tpu.memory_space<vmem>>) attributes {dimension_semantics = [#tpu.dimension_semantics<arbitrary>], iteration_bounds = array<i64: 2>, scalar_prefetch = 0 : i64, scratch_operands = 1 : i64, tpu.core_type = #tpu.core_type<tc>, window_params = [{pipeline_mode = #tpu.pipeline_mode<synchronous>, transform_indices = @transform_0, window_bounds = array<i64: 128, 128>}, {transform_indices = @transform_1, window_bounds = array<i64: 1, 128, 128>}, {transform_indices = @transform_2, window_bounds = array<i64: 1, 1, 128>}, {transform_indices = @transform_3, window_bounds = array<i64: 1, 1, 128>}, {pipeline_mode = #tpu.pipeline_mode<synchronous>, transform_indices = @transform_4, window_bounds = array<i64: 128, 128>}]} {
    %c0_i32 = arith.constant 0 : i32
    %0 = arith.cmpi eq, %arg0, %c0_i32 : i32
    %1 = arith.extui %0 : i1 to i32
    %c0_i32_0 = arith.constant 0 : i32
    %2 = arith.cmpi ne, %1, %c0_i32_0 : i32
    scf.if %2 {
      %c0_19 = arith.constant 0 : index
      %c0_20 = arith.constant 0 : index
      %36 = vector.load %arg1[%c0_19, %c0_20] : memref<128x128xf32, #tpu.memory_space<vmem>>, vector<128x128xf32>
      %c0_21 = arith.constant 0 : index
      %c0_22 = arith.constant 0 : index
      %37 = vector.load %arg6[%c0_21, %c0_22] : memref<128x128xf32, #tpu.memory_space<vmem>>, vector<128x128xf32>
      tpu.vector_store %arg6[%c0_21, %c0_22], %36 {strides = array<i32>} : memref<128x128xf32, #tpu.memory_space<vmem>>, vector<128x128xf32>,
    } else {
    }
    %c0 = arith.constant 0 : index
    %c0_1 = arith.constant 0 : index
    %3 = vector.load %arg6[%c0, %c0_1] : memref<128x128xf32, #tpu.memory_space<vmem>>, vector<128x128xf32>
    %c0_2 = arith.constant 0 : index
    %c0_3 = arith.constant 0 : index
    %c0_4 = arith.constant 0 : index
    %4 = vector.load %arg2[%c0_2, %c0_3, %c0_4] : memref<1x128x128xf32, #tpu.memory_space<vmem>>, vector<1x128x128xf32>
    %5 = vector.shape_cast %4 : vector<1x128x128xf32> to vector<128x128xf32>
    %cst = arith.constant dense<0.000000e+00> : vector<128x128xf32>
    %6 = tpu.matmul %3, %5, %cst {dimension_numbers = #tpu.dot_dimension_numbers<[1], [0], [0], [1], [0, 0, 1, 1], [], []>} : vector<128x128xf32>, vector<128x128xf32>, vector<128x128xf32> -> vector<128x128xf32>
    %cst_5 = arith.constant dense<0.000000e+00> : vector<128xf32>
    %7 = vector.multi_reduction <add>, %6, %cst_5 [0] : vector<128x128xf32> to vector<128xf32>
    %8 = vector.shape_cast %7 : vector<128xf32> to vector<1x128xf32>
    %cst_6 = arith.constant 7.812500e-03 : f32
    %9 = vector.broadcast %cst_6 : f32 to vector<1x128xf32>
    %10 = arith.mulf %8, %9 : vector<1x128xf32>
    %11 = vector.broadcast %10 : vector<1x128xf32> to vector<128x128xf32>
    %12 = arith.subf %6, %11 : vector<128x128xf32>
    %13 = arith.mulf %12, %12 : vector<128x128xf32>
    %cst_7 = arith.constant dense<0.000000e+00> : vector<128xf32>
    %14 = vector.multi_reduction <add>, %13, %cst_7 [0] : vector<128x128xf32> to vector<128xf32>
    %15 = vector.shape_cast %14 : vector<128xf32> to vector<1x128xf32>
    %cst_8 = arith.constant 7.812500e-03 : f32
    %16 = vector.broadcast %cst_8 : f32 to vector<1x128xf32>
    %17 = arith.mulf %15, %16 : vector<1x128xf32>
    %c0_9 = arith.constant 0 : index
    %c0_10 = arith.constant 0 : index
    %c0_11 = arith.constant 0 : index
    %18 = vector.load %arg3[%c0_9, %c0_10, %c0_11] : memref<1x1x128xf32, #tpu.memory_space<vmem>>, vector<1x1x128xf32>
    %19 = vector.shape_cast %18 : vector<1x1x128xf32> to vector<1x128xf32>
    %cst_12 = arith.constant 9.99999974E-6 : f32
    %20 = vector.broadcast %cst_12 : f32 to vector<1x128xf32>
    %21 = arith.addf %17, %20 : vector<1x128xf32>
    %22 = math.rsqrt %21 : vector<1x128xf32>
    %23 = arith.mulf %19, %22 : vector<1x128xf32>
    %24 = vector.broadcast %23 : vector<1x128xf32> to vector<128x128xf32>
    %25 = arith.mulf %12, %24 : vector<128x128xf32>
    %c0_13 = arith.constant 0 : index
    %c0_14 = arith.constant 0 : index
    %c0_15 = arith.constant 0 : index
    %26 = vector.load %arg4[%c0_13, %c0_14, %c0_15] : memref<1x1x128xf32, #tpu.memory_space<vmem>>, vector<1x1x128xf32>
    %27 = vector.shape_cast %26 : vector<1x1x128xf32> to vector<1x128xf32>
    %28 = vector.broadcast %27 : vector<1x128xf32> to vector<128x128xf32>
    %29 = arith.addf %25, %28 : vector<128x128xf32>
    %c1_i32 = arith.constant 1 : i32
    %30 = arith.cmpi slt, %arg0, %c1_i32 : i32
    %31 = arith.extui %30 : i1 to i32
    %c0_i32_16 = arith.constant 0 : i32
    %32 = arith.cmpi ne, %31, %c0_i32_16 : i32
    scf.if %32 {
      %cst_19 = arith.constant 0.000000e+00 : f32
      %36 = vector.broadcast %cst_19 : f32 to vector<128x128xf32>
      %37 = arith.maximumf %29, %36 : vector<128x128xf32>
      %c0_20 = arith.constant 0 : index
      %c0_21 = arith.constant 0 : index
      %38 = vector.load %arg6[%c0_20, %c0_21] : memref<128x128xf32, #tpu.memory_space<vmem>>, vector<128x128xf32>
      tpu.vector_store %arg6[%c0_20, %c0_21], %37 {strides = array<i32>} : memref<128x128xf32, #tpu.memory_space<vmem>>, vector<128x128xf32>,
    } else {
    }
    %c1_i32_17 = arith.constant 1 : i32
    %33 = arith.cmpi eq, %arg0, %c1_i32_17 : i32
    %34 = arith.extui %33 : i1 to i32
    %c0_i32_18 = arith.constant 0 : i32
    %35 = arith.cmpi ne, %34, %c0_i32_18 : i32
    scf.if %35 {
      %c0_19 = arith.constant 0 : index
      %c0_20 = arith.constant 0 : index
      %36 = vector.load %arg5[%c0_19, %c0_20] : memref<128x128xf32, #tpu.memory_space<vmem>>, vector<128x128xf32>
      tpu.vector_store %arg5[%c0_19, %c0_20], %29 {strides = array<i32>} : memref<128x128xf32, #tpu.memory_space<vmem>>, vector<128x128xf32>,
    } else {
    }
    return
  }
  func.func @transform_0(%arg0: i32) -> (i32, i32) {
    %c0_i32 = arith.constant 0 : i32
    %c0_i32_0 = arith.constant 0 : i32
    %c0_i32_1 = arith.constant 0 : i32
    return %c0_i32, %c0_i32_0 : i32, i32
  }
  func.func @transform_1(%arg0: i32) -> (i32, i32, i32) {
    %c0_i32 = arith.constant 0 : i32
    %c0_i32_0 = arith.constant 0 : i32
    %c0_i32_1 = arith.constant 0 : i32
    return %arg0, %c0_i32, %c0_i32_0 : i32, i32, i32
  }
  func.func @transform_2(%arg0: i32) -> (i32, i32, i32) {
    %c0_i32 = arith.constant 0 : i32
    %c0_i32_0 = arith.constant 0 : i32
    %c0_i32_1 = arith.constant 0 : i32
    return %arg0, %c0_i32, %c0_i32_0 : i32, i32, i32
  }
  func.func @transform_3(%arg0: i32) -> (i32, i32, i32) {
    %c0_i32 = arith.constant 0 : i32
    %c0_i32_0 = arith.constant 0 : i32
    %c0_i32_1 = arith.constant 0 : i32
    return %arg0, %c0_i32, %c0_i32_0 : i32, i32, i32
  }
  func.func @transform_4(%arg0: i32) -> (i32, i32) {
    %c0_i32 = arith.constant 0 : i32
    %c0_i32_0 = arith.constant 0 : i32
    %c0_i32_1 = arith.constant 0 : i32
    return %c0_i32, %c0_i32_0 : i32, i32
  }
}

</mosaic_0001>

<llo_original>
// kernel: tpu_custom_call.1
$region0: #{tpu_custom_call.1}
  #allocation0 [shape = 'u32[]', space=smem, size = 0x4, offset = 0x4, fixed_abs, tag = 'smem constant byte address 0x4 - core index']
  #allocation1 [shape = 'u32[144,128]{1,0:T(1,128)}', space=vmem, size = 0x12000, scoped, tag = 'internal scratch']
  #allocation2 [shape = 'f32[128,128]{1,0:T(8,128)}', space=vmem, size = 0x10000, scoped, tag = 'scratch operand']
  %s0 = inlined_call_operand.hbm [shape: f32[128,128], index: 0, kind: input, shape index: {}]
  %s1 = inlined_call_operand.hbm [shape: f32[2,128,128], index: 1, kind: input, shape index: {}]
  %s2 = inlined_call_operand.vmem [shape: f32[2,1,128], index: 2, kind: input, shape index: {}]
  %s3 = inlined_call_operand.vmem [shape: f32[2,1,128], index: 3, kind: input, shape index: {}]
  %s4 = inlined_call_operand.hbm [shape: f32[128,128], index: 4, kind: output, shape index: {}]
  %s5 = sld [smem:[#allocation0]]
  $region69: #{tpu_custom_call.1} parent=0
    _
  %s7 = ssub.s32 1, %s5
  %s8 = scalar_select 0, %s7, %s5
  $region1: #{tpu_custom_call.1} parent=0
    #allocation3 [shape = 'u8[65536]{0}', space=vmem, size = 0x10000, scoped, tag = 'input window, operand 0, single buffered']
    #allocation4 [shape = 's32[2]{0}', space=sflag, size = 0x8, scoped, tag = 'scoped memory for tpu_custom_call.1']
    #allocation5 [shape = 's32[2]{0}', space=sflag, size = 0x8, scoped, tag = 'scoped memory for tpu_custom_call.1']
    #allocation6 [shape = 'u8[131072]{0}', space=vmem, size = 0x20000, scoped, tag = 'input window, operand 1']
    #allocation7 [shape = 's32[2]{0}', space=sflag, size = 0x8, scoped, tag = 'scoped memory for tpu_custom_call.1']
    #allocation8 [shape = 'u8[65536]{0}', space=vmem, size = 0x10000, scoped, tag = 'output window, operand 0, single buffered']
    %9 = vsyncpa [#allocation4], 0
    %10 = vsyncpa [#allocation7], 0
    %s11 = scalar_lea.sflag [#allocation7], 1
    %12 = vsyncpa %s11, 0
    %13 = vsyncpa [#allocation5], 0
    loop: start=0, step=1, limit=4
    $region2: #{tpu_custom_call.1} parent=1 // loop_pre_header
      _
    $region3: #{tpu_custom_call.1} parent=1 // loop_header
      %s15 = sphi 0, %s19
      %p16 = scmp.ge.s32.totalorder %s15, 4
      %s23 = sphi 0, %s23
      %s25 = sphi 0, %s23
      %s26 = sphi 0, %s25
      %s40 = sphi 0, %s26
      %s46 = sphi 0, %s48
      %s49 = sphi 0, %s46
      %s50 = sphi 0, %s49
      %s66 = sphi 0, %s50
      %s72 = sphi 0, %s74
      %s75 = sphi 0, %s72
      %s76 = sphi 0, %s75
      %s92 = sphi 0, %s76
      %s98 = sphi 0, %s100
      %s101 = sphi 0, %s98
      %s102 = sphi 0, %s101
      %s118 = sphi 0, %s102
      %s122 = sphi 0, %s122
      %s124 = sphi 0, %s122
      %s125 = sphi 0, %s124
      %s139 = sphi 0, %s125
    $region4: #{tpu_custom_call.1} parent=1 // loop_header_branch
      %18 = sbr.rel (%p16) target = $region8
    $region5: #{tpu_custom_call.1} parent=1 // loop_body
      %s20 = ssub.s32 %s15, 1
      %s21 = ssub.s32 %s15, 2
      %s22 = sadd.s32 %s15, 1
      %s24 = sadd.s32 %s23, 1
      %p27 = scmp.eq.s32.totalorder %s15, 1
      %p28 = scmp.ne.s32.totalorder %s23, %s25
      %p29 = scmp.eq.s32.totalorder %s15, 0
      %p30 = por %p28, %p29
      %p31 = scmp.ne.s32.totalorder %s23, %s25
      %p32 = scmp.eq.s32.totalorder %s20, 1
      %p33 = por %p31, %p32
      %p34 = scmp.ne.s32.totalorder %s25, %s26
      %p35 = scmp.eq.s32.totalorder %s20, 0
      %p36 = por %p34, %p35
      %p37 = scmp.ne.s32.totalorder %s25, %s26
      %p38 = scmp.eq.s32.totalorder %s21, 1
      %p39 = por %p37, %p38
      %p41 = scmp.ne.s32.totalorder %s26, %s40
      %p42 = scmp.eq.s32.totalorder %s21, 0
      %p43 = por %p41, %p42
      %s44 = ssub.s32 %s15, %s22
      %p45 = scmp.eq.s32.totalorder %s44, 0
      %s47 = sadd.s32 %s46, 1
      %s48 = scalar_select %p45, %s46, %s47
      %p51 = pneg %p45
      %p52 = scmp.eq.s32.totalorder %s15, 1
      %p53 = por %p51, %p52
      %p54 = scmp.ne.s32.totalorder %s46, %s49
      %p55 = scmp.eq.s32.totalorder %s15, 0
      %p56 = por %p54, %p55
      %p57 = scmp.ne.s32.totalorder %s46, %s49
      %p58 = scmp.eq.s32.totalorder %s20, 1
      %p59 = por %p57, %p58
      %p60 = scmp.ne.s32.totalorder %s49, %s50
      %p61 = scmp.eq.s32.totalorder %s20, 0
      %p62 = por %p60, %p61
      %p63 = scmp.ne.s32.totalorder %s49, %s50
      %p64 = scmp.eq.s32.totalorder %s21, 1
      %p65 = por %p63, %p64
      %p67 = scmp.ne.s32.totalorder %s50, %s66
      %p68 = scmp.eq.s32.totalorder %s21, 0
      %p69 = por %p67, %p68
      %s70 = ssub.s32 %s15, %s22
      %p71 = scmp.eq.s32.totalorder %s70, 0
      %s73 = sadd.s32 %s72, 1
      %s74 = scalar_select %p71, %s72, %s73
      %p77 = pneg %p71
      %p78 = scmp.eq.s32.totalorder %s15, 1
      %p79 = por %p77, %p78
      %p80 = scmp.ne.s32.totalorder %s72, %s75
      %p81 = scmp.eq.s32.totalorder %s15, 0
      %p82 = por %p80, %p81
      %p83 = scmp.ne.s32.totalorder %s72, %s75
      %p84 = scmp.eq.s32.totalorder %s20, 1
      %p85 = por %p83, %p84
      %p86 = scmp.ne.s32.totalorder %s75, %s76
      %p87 = scmp.eq.s32.totalorder %s20, 0
      %p88 = por %p86, %p87
      %p89 = scmp.ne.s32.totalorder %s75, %s76
      %p90 = scmp.eq.s32.totalorder %s21, 1
      %p91 = por %p89, %p90
      %p93 = scmp.ne.s32.totalorder %s76, %s92
      %p94 = scmp.eq.s32.totalorder %s21, 0
      %p95 = por %p93, %p94
      %s96 = ssub.s32 %s15, %s22
      %p97 = scmp.eq.s32.totalorder %s96, 0
      %s99 = sadd.s32 %s98, 1
      %s100 = scalar_select %p97, %s98, %s99
      %p103 = pneg %p97
      %p104 = scmp.eq.s32.totalorder %s15, 1
      %p105 = por %p103, %p104
      %p106 = scmp.ne.s32.totalorder %s98, %s101
      %p107 = scmp.eq.s32.totalorder %s15, 0
      %p108 = por %p106, %p107
      %p109 = scmp.ne.s32.totalorder %s98, %s101
      %p110 = scmp.eq.s32.totalorder %s20, 1
      %p111 = por %p109, %p110
      %p112 = scmp.ne.s32.totalorder %s101, %s102
      %p113 = scmp.eq.s32.totalorder %s20, 0
      %p114 = por %p112, %p113
      %p115 = scmp.ne.s32.totalorder %s101, %s102
      %p116 = scmp.eq.s32.totalorder %s21, 1
      %p117 = por %p115, %p116
      %p119 = scmp.ne.s32.totalorder %s102, %s118
      %p120 = scmp.eq.s32.totalorder %s21, 0
      %p121 = por %p119, %p120
      %s123 = sadd.s32 %s122, 1
      %p126 = scmp.eq.s32.totalorder %s15, 1
      %p127 = scmp.ne.s32.totalorder %s122, %s124
      %p128 = scmp.eq.s32.totalorder %s15, 0
      %p129 = por %p127, %p128
      %p130 = scmp.ne.s32.totalorder %s122, %s124
      %p131 = scmp.eq.s32.totalorder %s20, 1
      %p132 = por %p130, %p131
      %p133 = scmp.ne.s32.totalorder %s124, %s125
      %p134 = scmp.eq.s32.totalorder %s20, 0
      %p135 = por %p133, %p134
      %p136 = scmp.ne.s32.totalorder %s124, %s125
      %p137 = scmp.eq.s32.totalorder %s21, 1
      %p138 = por %p136, %p137
      %p140 = scmp.ne.s32.totalorder %s125, %s139
      %p141 = scmp.eq.s32.totalorder %s21, 0
      %p142 = por %p140, %p141
      %p143 = scmp.le.s32.totalorder 1, %s15
      %p144 = scmp.lt.s32.totalorder %s15, 3
      %p145 = pnand %p143, %p144
      %p146 = pneg %p145
      // Predicated region
      $region9: #{tpu_custom_call.1} parent=5 // pred_check
        _
      $region10: #{tpu_custom_call.1} parent=5 // pred_check_branch
        %148 = sbr.rel (%p145) target = $region12
      $region11: #{tpu_custom_call.1} parent=5 // pred_region
        %s149 = ssub.s32 %s15, 1
        // Predicated region
        $region13: #{tpu_custom_call.1} parent=11 // pred_check
          %p150 = pneg %p36
        $region14: #{tpu_custom_call.1} parent=11 // pred_check_branch
          %152 = sbr.rel (%p150) target = $region16
        $region15: #{tpu_custom_call.1} parent=11 // pred_region
          %s154 = ssub.s32 2048, 2048
          %155 = vsyncadd [#allocation4], %s154
          %s156 = sshll.u32 [#allocation3], 4
          %s157 = int_to_ptr.vmem [resolvable:$true] %s156
          %162 = dma.hbm_to_vmem [thread:$0]  %s0, 2048, %s157, [#allocation4], 128, 128, 8
        $region16: #{tpu_custom_call.1} parent=11 // pred_fallthru
          _
      $region12: #{tpu_custom_call.1} parent=5 // pred_fallthru
        _
      %p163 = scmp.lt.s32.totalorder %s15, 2
      // Predicated region
      $region17: #{tpu_custom_call.1} parent=5 // pred_check
        %p164 = pneg %p163
      $region18: #{tpu_custom_call.1} parent=5 // pred_check_branch
        %166 = sbr.rel (%p164) target = $region20
      $region19: #{tpu_custom_call.1} parent=5 // pred_region
        // Predicated region
        $region21: #{tpu_custom_call.1} parent=19 // pred_check
          %p167 = pneg %p56
        $region22: #{tpu_custom_call.1} parent=19 // pred_check_branch
          %169 = sbr.rel (%p167) target = $region24
        $region23: #{tpu_custom_call.1} parent=19 // pred_region
          %s170 = sand.u32 %s46, 1
          %s171 = scalar_lea.sflag [#allocation7], %s170
          %s172 = sand.u32 %s46, 1
          %s173 = smul.addr %s172, 128
          %s174 = scalar_lea.vmem [#allocation6], %s173
          %s176 = ssub.s32 2048, 2048
          %177 = vsyncadd %s171, %s176
          %s178 = smul.addr %s15, 16
          %s179 = smul.addr %s178, 128
          %s180 = scalar_lea.hbm %s1, %s179
          %s181 = sshll.u32 %s174, 4
          %s182 = int_to_ptr.vmem [resolvable:$true] %s181
          %187 = dma.hbm_to_vmem [thread:$0]  %s180, 2048, %s182, %s171, 128, 128, 8
        $region24: #{tpu_custom_call.1} parent=19 // pred_fallthru
          _
        // Predicated region
        $region25: #{tpu_custom_call.1} parent=19 // pred_check
          %p188 = pneg %p82
        $region26: #{tpu_custom_call.1} parent=19 // pred_check_branch
          %190 = sbr.rel (%p188) target = $region28
        $region27: #{tpu_custom_call.1} parent=19 // pred_region
          %p191 = scmp.lt.s32.totalorder %s15, 1
          %s192 = scalar_select %p191, %s15, 1
          %s193 = scalar_lea.vmem %s2, %s192
        $region28: #{tpu_custom_call.1} parent=19 // pred_fallthru
          _
        // Predicated region
        $region29: #{tpu_custom_call.1} parent=19 // pred_check
          %p194 = pneg %p108
        $region30: #{tpu_custom_call.1} parent=19 // pred_check_branch
          %196 = sbr.rel (%p194) target = $region32
        $region31: #{tpu_custom_call.1} parent=19 // pred_region
          %p197 = scmp.lt.s32.totalorder %s15, 1
          %s198 = scalar_select %p197, %s15, 1
          %s199 = scalar_lea.vmem %s3, %s198
        $region32: #{tpu_custom_call.1} parent=19 // pred_fallthru
          _
      $region20: #{tpu_custom_call.1} parent=5 // pred_fallthru
        _
      %p200 = scmp.le.s32.totalorder 1, %s15
      %p201 = scmp.lt.s32.totalorder %s15, 3
      %p202 = pnand %p200, %p201
      %p203 = pneg %p202
      // Predicated region
      $region33: #{tpu_custom_call.1} parent=5 // pred_check
        _
      $region34: #{tpu_custom_call.1} parent=5 // pred_check_branch
        %205 = sbr.rel (%p202) target = $region36
      $region35: #{tpu_custom_call.1} parent=5 // pred_region
        %s206 = ssub.s32 %s15, 1
        // Predicated region
        $region37: #{tpu_custom_call.1} parent=35 // pred_check
          %p207 = pneg %p36
        $region38: #{tpu_custom_call.1} parent=35 // pred_check_branch
          %209 = sbr.rel (%p207) target = $region40
        $region39: #{tpu_custom_call.1} parent=35 // pred_region
          %210 = dma.done [#allocation4], 2048
        $region40: #{tpu_custom_call.1} parent=35 // pred_fallthru
          _
        %s211 = sand.u32 %s49, 1
        %s212 = scalar_lea.sflag [#allocation7], %s211
        %s213 = sand.u32 %s49, 1
        %s214 = smul.addr %s213, 128
        %s215 = scalar_lea.vmem [#allocation6], %s214
        // Predicated region
        $region41: #{tpu_custom_call.1} parent=35 // pred_check
          %p216 = pneg %p62
        $region42: #{tpu_custom_call.1} parent=35 // pred_check_branch
          %218 = sbr.rel (%p216) target = $region44
        $region43: #{tpu_custom_call.1} parent=35 // pred_region
          %219 = dma.done %s212, 2048
        $region44: #{tpu_custom_call.1} parent=35 // pred_fallthru
          _
        %p220 = pneg %p36
        %p221 = pneg %p33
        %s222 = sand.u32 %s49, 1
        %s223 = scalar_lea.sflag [#allocation7], %s222
        %s224 = sand.u32 %s49, 1
        %s225 = smul.addr %s224, 128
        %s226 = scalar_lea.vmem [#allocation6], %s225
        %p227 = pneg %p62
        %p228 = pneg %p59
        %p229 = scmp.lt.s32.totalorder %s20, 1
        %s230 = scalar_select %p229, %s20, 1
        %s231 = scalar_lea.vmem %s2, %s230
        %p232 = pneg %p88
        %p233 = pneg %p85
        %p234 = scmp.lt.s32.totalorder %s20, 1
        %s235 = scalar_select %p234, %s20, 1
        %s236 = scalar_lea.vmem %s3, %s235
        %p237 = pneg %p114
        %p238 = pneg %p111
        %p239 = pneg %p135
        %p240 = pneg %p132
        %p241 = scmp.lt.s32.totalorder %s20, 1
        %s242 = scalar_select %p241, %s20, 1
        %s243 = scalar_lea.vmem %s2, %s242
        %p244 = scmp.lt.s32.totalorder %s20, 1
        %s245 = scalar_select %p244, %s20, 1
        %s246 = scalar_lea.vmem %s3, %s245
        %p247 = scmp.eq.s32.totalorder %s20, 0
        // Predicated region
        $region45: #{tpu_custom_call.1} parent=35 // pred_check
          %p248 = pneg %p247
        $region46: #{tpu_custom_call.1} parent=35 // pred_check_branch
          %250 = sbr.rel (%p248) target = $region48
        $region47: #{tpu_custom_call.1} parent=35 // pred_region
          %v251 = vld [vmem:[#allocation3] sm:$0xff]
          %v252 = vld [vmem:[#allocation3 + $0x8] sm:$0xff]
          %v253 = vld [vmem:[#allocation3 + $0x10] sm:$0xff]
          %v254 = vld [vmem:[#allocation3 + $0x18] sm:$0xff]
          %v255 = vld [vmem:[#allocation3 + $0x20] sm:$0xff]
          %v256 = vld [vmem:[#allocation3 + $0x28] sm:$0xff]
          %v257 = vld [vmem:[#allocation3 + $0x30] sm:$0xff]
          %v258 = vld [vmem:[#allocation3 + $0x38] sm:$0xff]
          %v259 = vld [vmem:[#allocation3 + $0x40] sm:$0xff]
          %v260 = vld [vmem:[#allocation3 + $0x48] sm:$0xff]
          %v261 = vld [vmem:[#allocation3 + $0x50] sm:$0xff]
          %v262 = vld [vmem:[#allocation3 + $0x58] sm:$0xff]
          %v263 = vld [vmem:[#allocation3 + $0x60] sm:$0xff]
          %v264 = vld [vmem:[#allocation3 + $0x68] sm:$0xff]
          %v265 = vld [vmem:[#allocation3 + $0x70] sm:$0xff]
          %v266 = vld [vmem:[#allocation3 + $0x78] sm:$0xff]
          %267 = vst [vmem:[#allocation2] sm:$0xff] %v251
          %268 = vst [vmem:[#allocation2 + $0x8] sm:$0xff] %v252
          %269 = vst [vmem:[#allocation2 + $0x10] sm:$0xff] %v253
          %270 = vst [vmem:[#allocation2 + $0x18] sm:$0xff] %v254
          %271 = vst [vmem:[#allocation2 + $0x20] sm:$0xff] %v255
          %272 = vst [vmem:[#allocation2 + $0x28] sm:$0xff] %v256
          %273 = vst [vmem:[#allocation2 + $0x30] sm:$0xff] %v257
          %274 = vst [vmem:[#allocation2 + $0x38] sm:$0xff] %v258
          %275 = vst [vmem:[#allocation2 + $0x40] sm:$0xff] %v259
          %276 = vst [vmem:[#allocation2 + $0x48] sm:$0xff] %v260
          %277 = vst [vmem:[#allocation2 + $0x50] sm:$0xff] %v261
          %278 = vst [vmem:[#allocation2 + $0x58] sm:$0xff] %v262
          %279 = vst [vmem:[#allocation2 + $0x60] sm:$0xff] %v263
          %280 = vst [vmem:[#allocation2 + $0x68] sm:$0xff] %v264
          %281 = vst [vmem:[#allocation2 + $0x70] sm:$0xff] %v265
          %282 = vst [vmem:[#allocation2 + $0x78] sm:$0xff] %v266
        $region48: #{tpu_custom_call.1} parent=35 // pred_fallthru
          _
        %v283 = vld [vmem:[#allocation2] sm:$0xff]
        %v284 = vld [vmem:[#allocation2 + $0x8] sm:$0xff]
        %v285 = vld [vmem:[#allocation2 + $0x10] sm:$0xff]
        %v286 = vld [vmem:[#allocation2 + $0x18] sm:$0xff]
        %v287 = vld [vmem:[#allocation2 + $0x20] sm:$0xff]
        %v288 = vld [vmem:[#allocation2 + $0x28] sm:$0xff]
        %v289 = vld [vmem:[#allocation2 + $0x30] sm:$0xff]
        %v290 = vld [vmem:[#allocation2 + $0x38] sm:$0xff]
        %v291 = vld [vmem:[#allocation2 + $0x40] sm:$0xff]
        %v292 = vld [vmem:[#allocation2 + $0x48] sm:$0xff]
        %v293 = vld [vmem:[#allocation2 + $0x50] sm:$0xff]
        %v294 = vld [vmem:[#allocation2 + $0x58] sm:$0xff]
        %v295 = vld [vmem:[#allocation2 + $0x60] sm:$0xff]
        %v296 = vld [vmem:[#allocation2 + $0x68] sm:$0xff]
        %v297 = vld [vmem:[#allocation2 + $0x70] sm:$0xff]
        %v298 = vld [vmem:[#allocation2 + $0x78] sm:$0xff]
        %v299 = vld [vmem:[%s215] sm:$0xff]
        %v300 = vld [vmem:[%s215 + $0x8] sm:$0xff]
        %v301 = vld [vmem:[%s215 + $0x10] sm:$0xff]
        %v302 = vld [vmem:[%s215 + $0x18] sm:$0xff]
        %v303 = vld [vmem:[%s215 + $0x20] sm:$0xff]
        %v304 = vld [vmem:[%s215 + $0x28] sm:$0xff]
        %v305 = vld [vmem:[%s215 + $0x30] sm:$0xff]
        %v306 = vld [vmem:[%s215 + $0x38] sm:$0xff]
        %v307 = vld [vmem:[%s215 + $0x40] sm:$0xff]
        %v308 = vld [vmem:[%s215 + $0x48] sm:$0xff]
        %v309 = vld [vmem:[%s215 + $0x50] sm:$0xff]
        %v310 = vld [vmem:[%s215 + $0x58] sm:$0xff]
        %v311 = vld [vmem:[%s215 + $0x60] sm:$0xff]
        %v312 = vld [vmem:[%s215 + $0x68] sm:$0xff]
        %v313 = vld [vmem:[%s215 + $0x70] sm:$0xff]
        %v314 = vld [vmem:[%s215 + $0x78] sm:$0xff]
        %315 = vmatprep.subr.mxu0 0.0
        %316 = vmatpush1.msra.mxu0 %v299
        %317 = vmatprep.subr.mxu0 0.0
        %318 = vmatpush1.msra.mxu0 %v300
        %319 = vmatprep.subr.mxu0 0.0
        %320 = vmatpush1.msra.mxu0 %v301
        %321 = vmatprep.subr.mxu0 0.0
        %322 = vmatpush1.msra.mxu0 %v302
        %323 = vmatprep.subr.mxu0 0.0
        %324 = vmatpush1.msra.mxu0 %v303
        %325 = vmatprep.subr.mxu0 0.0
        %326 = vmatpush1.msra.mxu0 %v304
        %327 = vmatprep.subr.mxu0 0.0
        %328 = vmatpush1.msra.mxu0 %v305
        %329 = vmatprep.subr.mxu0 0.0
        %330 = vmatpush1.msra.mxu0 %v306
        %331 = vmatprep.subr.mxu0 0.0
        %332 = vmatpush1.msra.mxu0 %v307
        %333 = vmatprep.subr.mxu0 0.0
        %334 = vmatpush1.msra.mxu0 %v308
        %335 = vmatprep.subr.mxu0 0.0
        %336 = vmatpush1.msra.mxu0 %v309
        %337 = vmatprep.subr.mxu0 0.0
        %338 = vmatpush1.msra.mxu0 %v310
        %339 = vmatprep.subr.mxu0 0.0
        %340 = vmatpush1.msra.mxu0 %v311
        %341 = vmatprep.subr.mxu0 0.0
        %342 = vmatpush1.msra.mxu0 %v312
        %343 = vmatprep.subr.mxu0 0.0
        %344 = vmatpush1.msra.mxu0 %v313
        %345 = vmatprep.subr.mxu0 0.0
        %346 = vmatpush1.msra.mxu0 %v314
        %347 = vmatprep.subr.mxu0 0.0
        %348 = vmatpush1.msra.mxu0 0.0
        %349 = vmatprep.subr.mxu0 0.0
        %350 = vmatpush1.msra.mxu0 0.0
        %351 = vmatprep.subr.mxu0 0.0
        %352 = vmatpush1.msra.mxu0 0.0
        %353 = vmatprep.subr.mxu0 0.0
        %354 = vmatpush1.msra.mxu0 0.0
        %355 = vmatprep.subr.mxu0 0.0
        %356 = vmatpush1.msra.mxu0 0.0
        %357 = vmatprep.subr.mxu0 0.0
        %358 = vmatpush1.msra.mxu0 0.0
        %359 = vmatprep.subr.mxu0 0.0
        %360 = vmatpush1.msra.mxu0 0.0
        %361 = vmatprep.subr.mxu0 0.0
        %362 = vmatpush1.msra.mxu0 0.0
        %363 = vmatprep.subr.mxu0 0.0
        %364 = vmatpush1.msra.mxu0 0.0
        %365 = vmatprep.subr.mxu0 0.0
        %366 = vmatpush1.msra.mxu0 0.0
        %367 = vmatprep.subr.mxu0 0.0
        %368 = vmatpush1.msra.mxu0 0.0
        %369 = vmatprep.subr.mxu0 0.0
        %370 = vmatpush1.msra.mxu0 0.0
        %371 = vmatprep.subr.mxu0 0.0
        %372 = vmatpush1.msra.mxu0 0.0
        %373 = vmatprep.subr.mxu0 0.0
        %374 = vmatpush1.msra.mxu0 0.0
        %375 = vmatprep.subr.mxu0 0.0
        %376 = vmatpush1.msra.mxu0 0.0
        %377 = vmatprep.subr.mxu0 0.0
        %378 = vmatpush1.msra.mxu0 0.0
        %379 = vmatprep.mubr.f32.mxu0 0.0
        %380 = vmatmul.mubr.f32.gmra.mrb[0].mxu0 %v283
        %v381 = vpop.f32.mrb[0].mxu0
        %v382 = vadd.f32 0.0, %v381
        %v383 = vpop.f32.mrb[0].mxu0
        %384 = vmatprep.mubr.f32.mxu0 0.0
        %385 = vmatmul.mubr.f32.gmra.mrb[0].mxu0 %v284
        %v386 = vpop.f32.mrb[0].mxu0
        %v387 = vadd.f32 0.0, %v386
        %v388 = vpop.f32.mrb[0].mxu0
        %389 = vmatprep.mubr.f32.mxu0 0.0
        %390 = vmatmul.mubr.f32.gmra.mrb[0].mxu0 %v285
        %v391 = vpop.f32.mrb[0].mxu0
        %v392 = vadd.f32 0.0, %v391
        %v393 = vpop.f32.mrb[0].mxu0
        %394 = vmatprep.mubr.f32.mxu0 0.0
        %395 = vmatmul.mubr.f32.gmra.mrb[0].mxu0 %v286
        %v396 = vpop.f32.mrb[0].mxu0
        %v397 = vadd.f32 0.0, %v396
        %v398 = vpop.f32.mrb[0].mxu0
        %399 = vmatprep.mubr.f32.mxu0 0.0
        %400 = vmatmul.mubr.f32.gmra.mrb[0].mxu0 %v287
        %v401 = vpop.f32.mrb[0].mxu0
        %v402 = vadd.f32 0.0, %v401
        %v403 = vpop.f32.mrb[0].mxu0
        %404 = vmatprep.mubr.f32.mxu0 0.0
        %405 = vmatmul.mubr.f32.gmra.mrb[0].mxu0 %v288
        %v406 = vpop.f32.mrb[0].mxu0
        %v407 = vadd.f32 0.0, %v406
        %v408 = vpop.f32.mrb[0].mxu0
        %409 = vmatprep.mubr.f32.mxu0 0.0
        %410 = vmatmul.mubr.f32.gmra.mrb[0].mxu0 %v289
        %v411 = vpop.f32.mrb[0].mxu0
        %v412 = vadd.f32 0.0, %v411
        %v413 = vpop.f32.mrb[0].mxu0
        %414 = vmatprep.mubr.f32.mxu0 0.0
        %415 = vmatmul.mubr.f32.gmra.mrb[0].mxu0 %v290
        %v416 = vpop.f32.mrb[0].mxu0
        %v417 = vadd.f32 0.0, %v416
        %v418 = vpop.f32.mrb[0].mxu0
        %419 = vmatprep.mubr.f32.mxu0 0.0
        %420 = vmatmul.mubr.f32.gmra.mrb[0].mxu0 %v291
        %v421 = vpop.f32.mrb[0].mxu0
        %v422 = vadd.f32 0.0, %v421
        %v423 = vpop.f32.mrb[0].mxu0
        %424 = vmatprep.mubr.f32.mxu0 0.0
        %425 = vmatmul.mubr.f32.gmra.mrb[0].mxu0 %v292
        %v426 = vpop.f32.mrb[0].mxu0
        %v427 = vadd.f32 0.0, %v426
        %v428 = vpop.f32.mrb[0].mxu0
        %429 = vmatprep.mubr.f32.mxu0 0.0
        %430 = vmatmul.mubr.f32.gmra.mrb[0].mxu0 %v293
        %v431 = vpop.f32.mrb[0].mxu0
        %v432 = vadd.f32 0.0, %v431
        %v433 = vpop.f32.mrb[0].mxu0
        %434 = vmatprep.mubr.f32.mxu0 0.0
        %435 = vmatmul.mubr.f32.gmra.mrb[0].mxu0 %v294
        %v436 = vpop.f32.mrb[0].mxu0
        %v437 = vadd.f32 0.0, %v436
        %v438 = vpop.f32.mrb[0].mxu0
        %439 = vmatprep.mubr.f32.mxu0 0.0
        %440 = vmatmul.mubr.f32.gmra.mrb[0].mxu0 %v295
        %v441 = vpop.f32.mrb[0].mxu0
        %v442 = vadd.f32 0.0, %v441
        %v443 = vpop.f32.mrb[0].mxu0
        %444 = vmatprep.mubr.f32.mxu0 0.0
        %445 = vmatmul.mubr.f32.gmra.mrb[0].mxu0 %v296
        %v446 = vpop.f32.mrb[0].mxu0
        %v447 = vadd.f32 0.0, %v446
        %v448 = vpop.f32.mrb[0].mxu0
        %449 = vmatprep.mubr.f32.mxu0 0.0
        %450 = vmatmul.mubr.f32.gmra.mrb[0].mxu0 %v297
        %v451 = vpop.f32.mrb[0].mxu0
        %v452 = vadd.f32 0.0, %v451
        %v453 = vpop.f32.mrb[0].mxu0
        %454 = vmatprep.mubr.f32.mxu0 0.0
        %455 = vmatmul.mubr.f32.gmra.mrb[0].mxu0 %v298
        %v456 = vpop.f32.mrb[0].mxu0
        %v457 = vadd.f32 0.0, %v456
        %v458 = vpop.f32.mrb[0].mxu0
        %459 = vdwg.mxu0
        %v460 = vadd.f32 %v382, %v387
        %v461 = vadd.f32 %v460, %v392
        %v462 = vadd.f32 %v461, %v397
        %v463 = vadd.f32 %v462, %v402
        %v464 = vadd.f32 %v463, %v407
        %v465 = vadd.f32 %v464, %v412
        %v466 = vadd.f32 %v465, %v417
        %v467 = vadd.f32 %v466, %v422
        %v468 = vadd.f32 %v467, %v427
        %v469 = vadd.f32 %v468, %v432
        %v470 = vadd.f32 %v469, %v437
        %v471 = vadd.f32 %v470, %v442
        %v472 = vadd.f32 %v471, %v447
        %v473 = vadd.f32 %v472, %v452
        %v474 = vadd.f32 %v473, %v457
        %v475 = vrot.slane %v474, 4
        %v476 = vadd.f32 %v474, %v475
        %v477 = vrot.slane %v476, 2
        %v478 = vadd.f32 %v476, %v477
        %v479 = vrot.slane %v478, 1
        %v480 = vadd.f32 %v478, %v479
        %v481 = vmul.f32 %v480, 0.0078125
        %v482 = vsub.f32 %v382, %v481
        %v483 = vsub.f32 %v387, %v481
        %v484 = vsub.f32 %v392, %v481
        %v485 = vsub.f32 %v397, %v481
        %v486 = vsub.f32 %v402, %v481
        %v487 = vsub.f32 %v407, %v481
        %v488 = vsub.f32 %v412, %v481
        %v489 = vsub.f32 %v417, %v481
        %v490 = vsub.f32 %v422, %v481
        %v491 = vsub.f32 %v427, %v481
        %v492 = vsub.f32 %v432, %v481
        %v493 = vsub.f32 %v437, %v481
        %v494 = vsub.f32 %v442, %v481
        %v495 = vsub.f32 %v447, %v481
        %v496 = vsub.f32 %v452, %v481
        %v497 = vsub.f32 %v457, %v481
        %v498 = vmul.f32 %v482, %v482
        %v499 = vmul.f32 %v483, %v483
        %v500 = vmul.f32 %v484, %v484
        %v501 = vmul.f32 %v485, %v485
        %v502 = vmul.f32 %v486, %v486
        %v503 = vmul.f32 %v487, %v487
        %v504 = vmul.f32 %v488, %v488
        %v505 = vmul.f32 %v489, %v489
        %v506 = vmul.f32 %v490, %v490
        %v507 = vmul.f32 %v491, %v491
        %v508 = vmul.f32 %v492, %v492
        %v509 = vmul.f32 %v493, %v493
        %v510 = vmul.f32 %v494, %v494
        %v511 = vmul.f32 %v495, %v495
        %v512 = vmul.f32 %v496, %v496
        %v513 = vmul.f32 %v497, %v497
        %v514 = vadd.f32 %v498, %v499
        %v515 = vadd.f32 %v514, %v500
        %v516 = vadd.f32 %v515, %v501
        %v517 = vadd.f32 %v516, %v502
        %v518 = vadd.f32 %v517, %v503
        %v519 = vadd.f32 %v518, %v504
        %v520 = vadd.f32 %v519, %v505
        %v521 = vadd.f32 %v520, %v506
        %v522 = vadd.f32 %v521, %v507
        %v523 = vadd.f32 %v522, %v508
        %v524 = vadd.f32 %v523, %v509
        %v525 = vadd.f32 %v524, %v510
        %v526 = vadd.f32 %v525, %v511
        %v527 = vadd.f32 %v526, %v512
        %v528 = vadd.f32 %v527, %v513
        %v529 = vrot.slane %v528, 4
        %v530 = vadd.f32 %v528, %v529
        %v531 = vrot.slane %v530, 2
        %v532 = vadd.f32 %v530, %v531
        %v533 = vrot.slane %v532, 1
        %v534 = vadd.f32 %v532, %v533
        %v535 = vmul.f32 %v534, 0.0078125
        %v536 = vld [vmem:[%s243] sm:$0x1]
        %v537 = vadd.f32 %v535, 1e-05
        %v538 = vrsqrt.pop %v537
        %v539 = vmul.f32 %v536, %v538
        %v541 = vlaneseq
        %v542 = vshrl.u32 %v541, 7
        %v543 = vsub.s32 0, %v542
        %v544 = vrot.slane %v539, %v543
        %v546 = vmul.f32 %v482, %v544
        %v547 = vmul.f32 %v483, %v544
        %v548 = vmul.f32 %v484, %v544
        %v549 = vmul.f32 %v485, %v544
        %v550 = vmul.f32 %v486, %v544
        %v551 = vmul.f32 %v487, %v544
        %v552 = vmul.f32 %v488, %v544
        %v553 = vmul.f32 %v489, %v544
        %v554 = vmul.f32 %v490, %v544
        %v555 = vmul.f32 %v491, %v544
        %v556 = vmul.f32 %v492, %v544
        %v557 = vmul.f32 %v493, %v544
        %v558 = vmul.f32 %v494, %v544
        %v559 = vmul.f32 %v495, %v544
        %v560 = vmul.f32 %v496, %v544
        %v561 = vmul.f32 %v497, %v544
        %v562 = vld [vmem:[%s246] sm:$0x1]
        %v564 = vlaneseq
        %v565 = vshrl.u32 %v564, 7
        %v566 = vsub.s32 0, %v565
        %v567 = vrot.slane %v562, %v566
        %v569 = vadd.f32 %v546, %v567
        %v570 = vadd.f32 %v547, %v567
        %v571 = vadd.f32 %v548, %v567
        %v572 = vadd.f32 %v549, %v567
        %v573 = vadd.f32 %v550, %v567
        %v574 = vadd.f32 %v551, %v567
        %v575 = vadd.f32 %v552, %v567
        %v576 = vadd.f32 %v553, %v567
        %v577 = vadd.f32 %v554, %v567
        %v578 = vadd.f32 %v555, %v567
        %v579 = vadd.f32 %v556, %v567
        %v580 = vadd.f32 %v557, %v567
        %v581 = vadd.f32 %v558, %v567
        %v582 = vadd.f32 %v559, %v567
        %v583 = vadd.f32 %v560, %v567
        %v584 = vadd.f32 %v561, %v567
        %p585 = scmp.lt.s32.totalorder %s20, 1
        // Predicated region
        $region49: #{tpu_custom_call.1} parent=35 // pred_check
          %p586 = pneg %p585
        $region50: #{tpu_custom_call.1} parent=35 // pred_check_branch
          %588 = sbr.rel (%p586) target = $region52
        $region51: #{tpu_custom_call.1} parent=35 // pred_region
          %v589 = vmax.f32 %v569, 0.0
          %v590 = vmax.f32 %v570, 0.0
          %v591 = vmax.f32 %v571, 0.0
          %v592 = vmax.f32 %v572, 0.0
          %v593 = vmax.f32 %v573, 0.0
          %v594 = vmax.f32 %v574, 0.0
          %v595 = vmax.f32 %v575, 0.0
          %v596 = vmax.f32 %v576, 0.0
          %v597 = vmax.f32 %v577, 0.0
          %v598 = vmax.f32 %v578, 0.0
          %v599 = vmax.f32 %v579, 0.0
          %v600 = vmax.f32 %v580, 0.0
          %v601 = vmax.f32 %v581, 0.0
          %v602 = vmax.f32 %v582, 0.0
          %v603 = vmax.f32 %v583, 0.0
          %v604 = vmax.f32 %v584, 0.0
          %605 = vst [vmem:[#allocation2] sm:$0xff] %v589
          %606 = vst [vmem:[#allocation2 + $0x8] sm:$0xff] %v590
          %607 = vst [vmem:[#allocation2 + $0x10] sm:$0xff] %v591
          %608 = vst [vmem:[#allocation2 + $0x18] sm:$0xff] %v592
          %609 = vst [vmem:[#allocation2 + $0x20] sm:$0xff] %v593
          %610 = vst [vmem:[#allocation2 + $0x28] sm:$0xff] %v594
          %611 = vst [vmem:[#allocation2 + $0x30] sm:$0xff] %v595
          %612 = vst [vmem:[#allocation2 + $0x38] sm:$0xff] %v596
          %613 = vst [vmem:[#allocation2 + $0x40] sm:$0xff] %v597
          %614 = vst [vmem:[#allocation2 + $0x48] sm:$0xff] %v598
          %615 = vst [vmem:[#allocation2 + $0x50] sm:$0xff] %v599
          %616 = vst [vmem:[#allocation2 + $0x58] sm:$0xff] %v600
          %617 = vst [vmem:[#allocation2 + $0x60] sm:$0xff] %v601
          %618 = vst [vmem:[#allocation2 + $0x68] sm:$0xff] %v602
          %619 = vst [vmem:[#allocation2 + $0x70] sm:$0xff] %v603
          %620 = vst [vmem:[#allocation2 + $0x78] sm:$0xff] %v604
        $region52: #{tpu_custom_call.1} parent=35 // pred_fallthru
          _
        %p621 = scmp.eq.s32.totalorder %s20, 1
        // Predicated region
        $region53: #{tpu_custom_call.1} parent=35 // pred_check
          %p622 = pneg %p621
        $region54: #{tpu_custom_call.1} parent=35 // pred_check_branch
          %624 = sbr.rel (%p622) target = $region56
        $region55: #{tpu_custom_call.1} parent=35 // pred_region
          %625 = vst [vmem:[#allocation8] sm:$0xff] %v569
          %626 = vst [vmem:[#allocation8 + $0x8] sm:$0xff] %v570
          %627 = vst [vmem:[#allocation8 + $0x10] sm:$0xff] %v571
          %628 = vst [vmem:[#allocation8 + $0x18] sm:$0xff] %v572
          %629 = vst [vmem:[#allocation8 + $0x20] sm:$0xff] %v573
          %630 = vst [vmem:[#allocation8 + $0x28] sm:$0xff] %v574
          %631 = vst [vmem:[#allocation8 + $0x30] sm:$0xff] %v575
          %632 = vst [vmem:[#allocation8 + $0x38] sm:$0xff] %v576
          %633 = vst [vmem:[#allocation8 + $0x40] sm:$0xff] %v577
          %634 = vst [vmem:[#allocation8 + $0x48] sm:$0xff] %v578
          %635 = vst [vmem:[#allocation8 + $0x50] sm:$0xff] %v579
          %636 = vst [vmem:[#allocation8 + $0x58] sm:$0xff] %v580
          %637 = vst [vmem:[#allocation8 + $0x60] sm:$0xff] %v581
          %638 = vst [vmem:[#allocation8 + $0x68] sm:$0xff] %v582
          %639 = vst [vmem:[#allocation8 + $0x70] sm:$0xff] %v583
          %640 = vst [vmem:[#allocation8 + $0x78] sm:$0xff] %v584
        $region56: #{tpu_custom_call.1} parent=35 // pred_fallthru
          _
        // Predicated region
        $region57: #{tpu_custom_call.1} parent=35 // pred_check
          %p641 = pneg %p132
        $region58: #{tpu_custom_call.1} parent=35 // pred_check_branch
          %643 = sbr.rel (%p641) target = $region60
        $region59: #{tpu_custom_call.1} parent=35 // pred_region
          %s645 = ssub.s32 2048, 2048
          %646 = vsyncadd [#allocation5], %s645
          %s647 = sshll.u32 [#allocation8], 4
          %s648 = int_to_ptr.vmem [resolvable:$true] %s647
          %653 = dma.vmem_to_hbm [thread:$0]  %s648, 2048, %s4, [#allocation5], 128, 128, 8
        $region60: #{tpu_custom_call.1} parent=35 // pred_fallthru
          _
        // Predicated region
        $region61: #{tpu_custom_call.1} parent=35 // pred_check
          %p654 = pneg %p132
        $region62: #{tpu_custom_call.1} parent=35 // pred_check_branch
          %656 = sbr.rel (%p654) target = $region64
        $region63: #{tpu_custom_call.1} parent=35 // pred_region
          %657 = dma.done [#allocation5], 2048
        $region64: #{tpu_custom_call.1} parent=35 // pred_fallthru
          _
      $region36: #{tpu_custom_call.1} parent=5 // pred_fallthru
        _
      %p658 = scmp.le.s32.totalorder 2, %s15
      // Predicated region
      $region65: #{tpu_custom_call.1} parent=5 // pred_check
        %p659 = pneg %p658
      $region66: #{tpu_custom_call.1} parent=5 // pred_check_branch
        %661 = sbr.rel (%p659) target = $region68
      $region67: #{tpu_custom_call.1} parent=5 // pred_region
        %s662 = ssub.s32 %s15, 2
      $region68: #{tpu_custom_call.1} parent=5 // pred_fallthru
        _
    $region6: #{tpu_custom_call.1} parent=1 // loop_footer
      %s19 = sadd.s32 1, %s15
    $region7: #{tpu_custom_call.1} parent=1 // loop_footer_branch
      %14 = sbr.rel target = $region3
    $region8: #{tpu_custom_call.1} parent=1 // loop_exit
      _
    %663 = vsyncpa [#allocation4], 1
    %s664 = scalar_lea.sflag [#allocation4], 1
    %665 = vsyncpa %s664, 1
    %666 = vsyncpa [#allocation7], 1
    %s667 = scalar_lea.sflag [#allocation7], 1
    %668 = vsyncpa %s667, 1
    %669 = vsyncpa [#allocation5], 1
    %s670 = scalar_lea.sflag [#allocation5], 1
    %671 = vsyncpa %s670, 1

</llo_original>
